<compile_context>
chip_gen: v5e
topology: v5e:2x2
jax: 0.10.0
libtpu: 0.0.40
codegen_flags: <defaults>
</compile_context>

<pallas_src>
import functools

import jax
import jax.numpy as jnp
from jax.experimental import pallas as pl
from jax.experimental.pallas import tpu as pltpu

_LANE = 128
_SUBLANE = 8


def _build_pe_table(e_dim: int, max_len: int) -> jnp.ndarray:
    """Replicates the PyTorch __init__ sinusoidal table (glue, plain JAX)."""
    position = jnp.arange(0, max_len, dtype=jnp.float32)[:, None]          # (max_len, 1)
    div_term = 10000.0 ** (jnp.arange(0.0, e_dim, 2.0) / e_dim)            # (e_dim/2,)
    angles = position / div_term                                           # (max_len, e_dim/2)
    pe = jnp.zeros((max_len, e_dim), dtype=jnp.float32)
    pe = pe.at[:, 0::2].set(jnp.sin(angles))
    pe = pe.at[:, 1::2].set(jnp.cos(angles))
    return pe[None, :, :]                                                  # (1, max_len, e_dim)


# ----------------------------- kernels ------------------------------------- #

def _add_pe_kernel(x_ref, pe_ref, o_ref):
    # x_ref: (tb, td), pe_ref: (1, td) broadcast over the sublane (row) axis.
    o_ref[...] = (x_ref[...] + pe_ref[...]).astype(o_ref.dtype)


def _add_pe_dropout_kernel(x_ref, pe_ref, bits_ref, o_ref, *, threshold: int, scale: float):
    y = x_ref[...] + pe_ref[...]
    # Integer-threshold inverted dropout: keep with prob (1 - p), scale by 1/(1-p).
    keep = bits_ref[...] >= jnp.uint32(threshold)
    o_ref[...] = jnp.where(keep, y * scale, 0.0).astype(o_ref.dtype)


# ----------------------------- wrapper -------------------------------------- #

def _choose_tiles(n_rows: int, n_cols_padded: int,
                  bytes_per_elem: int = 4,
                  budget_bytes: int = 6 * 1024 * 1024):
    """Largest tile that stays well under the scoped-VMEM default on all gens
    (v7x has 64 MiB physical / 32 MiB default scoped VMEM)."""
    td = min(n_cols_padded, 16384)                     # multiple of 128 (cols are padded)
    per_row = td * bytes_per_elem * 3 * 2              # x + bits + out, double-buffered
    rows = max(1, budget_bytes // per_row)
    if rows >= n_rows:
        tb = n_rows                                    # full-dim block is always legal
    else:
        tb = max(_SUBLANE, (rows // _SUBLANE) * _SUBLANE)
    return tb, td


def positional_encoding(x: jnp.ndarray,
                        pe_table: jnp.ndarray,
                        key=None,
                        p: float = 0.1,
                        training: bool = True) -> jnp.ndarray:
    """x: (B, S, E) float32.  pe_table: (1, max_len, E).  Returns (B, S, E)."""
    B, S, E = x.shape
    D = S * E
    Dp = pl.cdiv(D, _LANE) * _LANE                     # lane-dense padded width

    # Lane-dense 2D views (pure layout plumbing; the op is elementwise).
    xf = x.reshape(B, D)
    pef = pe_table[:, :S, :].reshape(1, D).astype(x.dtype)
    if Dp != D:
        xf = jnp.pad(xf, ((0, 0), (0, Dp - D)))
        pef = jnp.pad(pef, ((0, 0), (0, Dp - D)))

    tb, td = _choose_tiles(B, Dp)
    grid = (pl.cdiv(B, tb), pl.cdiv(Dp, td))

    x_spec = pl.BlockSpec((tb, td), lambda i, j: (i, j))
    pe_spec = pl.BlockSpec((1, td), lambda i, j: (0, j))     # same pe block for every batch block
    out_spec = pl.BlockSpec((tb, td), lambda i, j: (i, j))

    use_dropout = training and p > 0.0
    if use_dropout:
        if key is None:
            key = jax.random.PRNGKey(0)
        bits = jax.random.bits(key, (B, Dp), dtype=jnp.uint32)
        threshold = min(int(round(p * (1 << 32))), (1 << 32) - 1)
        kernel = functools.partial(_add_pe_dropout_kernel,
                                   threshold=threshold,
                                   scale=1.0 / (1.0 - p))
        in_specs = [x_spec, pe_spec, pl.BlockSpec((tb, td), lambda i, j: (i, j))]
        args = (xf, pef, bits)
    else:
        kernel = _add_pe_kernel
        in_specs = [x_spec, pe_spec]
        args = (xf, pef)

    out = pl.pallas_call(
        kernel,
        out_shape=jax.ShapeDtypeStruct((B, Dp), x.dtype),
        grid=grid,
        in_specs=in_specs,
        out_specs=out_spec,
        compiler_params=pltpu.CompilerParams(
            dimension_semantics=("parallel", "parallel"),   # no cross-step state
        ),
    )(*args)

    return out[:, :D].reshape(B, S, E)


# ----------------------------- demo / sanity --------------------------------- #

if __name__ == "__main__":
    e_dim = 32
    max_len = 512
    dropout_p = 0.1
    B, S = 2, 8

    key = jax.random.PRNGKey(0)
    kx, kdrop = jax.random.split(key)
    x = jax.random.normal(kx, (B, S, e_dim), dtype=jnp.float32)
    pe_table = _build_pe_table(e_dim, max_len)

    # Training mode (dropout active)
    out_train = positional_encoding(x, pe_table, key=kdrop, p=dropout_p, training=True)
    out_train = jax.block_until_ready(out_train)

    # Eval mode (no dropout) must equal plain x + pe
    out_eval = positional_encoding(x, pe_table, key=kdrop, p=dropout_p, training=False)
    out_eval = jax.block_until_ready(out_eval)

    ref = x + pe_table[:, :S, :]
    assert out_eval.shape == (B, S, e_dim)
    assert jnp.allclose(out_eval, ref, atol=1e-6), "eval-mode mismatch vs reference"

    # Training mode: every element is either dropped (0) or ref scaled by 1/(1-p)
    scaled = ref / (1.0 - dropout_p)
    ok = jnp.where(out_train == 0.0, True,
                   jnp.isclose(out_train, scaled, atol=1e-5, rtol=1e-5))
    assert bool(jnp.all(ok)), "training-mode output is not a masked/scaled copy of x+pe"
    assert out_train.shape == (B, S, e_dim)

    print("KERNEL_OK")
</pallas_src>

<mosaic_0001>
module attributes {stable_mosaic.version = 11 : i64} {
  func.func @_add_pe_dropout_kernel(%arg0: i32, %arg1: i32, %arg2: memref<2x256xf32, #tpu.memory_space<vmem>>, %arg3: memref<1x256xf32, #tpu.memory_space<vmem>>, %arg4: memref<2x256xi32, #tpu.memory_space<vmem>>, %arg5: memref<2x256xf32, #tpu.memory_space<vmem>>) attributes {dimension_semantics = [#tpu.dimension_semantics<parallel>, #tpu.dimension_semantics<parallel>], iteration_bounds = array<i64: 1, 1>, scalar_prefetch = 0 : i64, scratch_operands = 0 : i64, tpu.core_type = #tpu.core_type<tc>, window_params = [{transform_indices = @transform_0, window_bounds = array<i64: 2, 256>}, {transform_indices = @transform_1, window_bounds = array<i64: 1, 256>}, {transform_indices = @transform_2, window_bounds = array<i64: 2, 256>}, {transform_indices = @transform_3, window_bounds = array<i64: 2, 256>}]} {
    %c0 = arith.constant 0 : index
    %c0_0 = arith.constant 0 : index
    %0 = vector.load %arg2[%c0, %c0_0] : memref<2x256xf32, #tpu.memory_space<vmem>>, vector<2x256xf32>
    %c0_1 = arith.constant 0 : index
    %c0_2 = arith.constant 0 : index
    %1 = vector.load %arg3[%c0_1, %c0_2] : memref<1x256xf32, #tpu.memory_space<vmem>>, vector<1x256xf32>
    %2 = vector.broadcast %1 : vector<1x256xf32> to vector<2x256xf32>
    %3 = arith.addf %0, %2 : vector<2x256xf32>
    %c0_3 = arith.constant 0 : index
    %c0_4 = arith.constant 0 : index
    %4 = vector.load %arg4[%c0_3, %c0_4] : memref<2x256xi32, #tpu.memory_space<vmem>>, vector<2x256xi32>
    %c429496730_i32 = arith.constant 429496730 : i32
    %5 = vector.broadcast %c429496730_i32 : i32 to vector<2x256xi32>
    %6 = arith.cmpi uge, %4, %5 : vector<2x256xi32>
    %cst = arith.constant 1.11111116 : f32
    %7 = vector.broadcast %cst : f32 to vector<2x256xf32>
    %8 = arith.mulf %3, %7 : vector<2x256xf32>
    %cst_5 = arith.constant 0.000000e+00 : f32
    %9 = vector.broadcast %cst_5 : f32 to vector<2x256xf32>
    %10 = arith.select %6, %8, %9 : vector<2x256xi1>, vector<2x256xf32>
    %c0_6 = arith.constant 0 : index
    %c0_7 = arith.constant 0 : index
    %11 = vector.load %arg5[%c0_6, %c0_7] : memref<2x256xf32, #tpu.memory_space<vmem>>, vector<2x256xf32>
    tpu.vector_store %arg5[%c0_6, %c0_7], %10 {strides = array<i32>} : memref<2x256xf32, #tpu.memory_space<vmem>>, vector<2x256xf32>,
    return
  }
  func.func @transform_0(%arg0: i32, %arg1: i32) -> (i32, i32) {
    %c0_i32 = arith.constant 0 : i32
    return %arg0, %arg1 : i32, i32
  }
  func.func @transform_1(%arg0: i32, %arg1: i32) -> (i32, i32) {
    %c0_i32 = arith.constant 0 : i32
    %c0_i32_0 = arith.constant 0 : i32
    return %c0_i32, %arg1 : i32, i32
  }
  func.func @transform_2(%arg0: i32, %arg1: i32) -> (i32, i32) {
    %c0_i32 = arith.constant 0 : i32
    return %arg0, %arg1 : i32, i32
  }
  func.func @transform_3(%arg0: i32, %arg1: i32) -> (i32, i32) {
    %c0_i32 = arith.constant 0 : i32
    return %arg0, %arg1 : i32, i32
  }
}

</mosaic_0001>

<llo_original>
// kernel: tpu_custom_call.1
$region0: #{tpu_custom_call.1}
  #allocation0 [shape = 'u32[]', space=smem, size = 0x4, offset = 0x4, fixed_abs, tag = 'smem constant byte address 0x4 - core index']
  #allocation1 [shape = 'u32[72,128]{1,0:T(1,128)}', space=vmem, size = 0x9000, scoped, tag = 'internal scratch']
  %s0 = inlined_call_operand.hbm [shape: f32[2,256], index: 0, kind: input, shape index: {}]
  %s1 = inlined_call_operand.hbm [shape: f32[1,256], index: 1, kind: input, shape index: {}]
  %s2 = inlined_call_operand.hbm [shape: u32[2,256], index: 2, kind: input, shape index: {}]
  %s3 = inlined_call_operand.hbm [shape: f32[2,256], index: 3, kind: output, shape index: {}]
  %s4 = sld [smem:[#allocation0]]
  $region34: #{tpu_custom_call.1} parent=0
    _
  %s6 = ssub.s32 1, %s4
  %s7 = scalar_select 0, %s6, %s4
  $region1: #{tpu_custom_call.1} parent=0
    #allocation2 [shape = 'u8[2048]{0}', space=vmem, size = 0x800, scoped, tag = 'input window, operand 0, single buffered']
    #allocation3 [shape = 's32[1]{0}', space=sflag, size = 0x4, scoped, tag = 'scoped memory for tpu_custom_call.1']
    #allocation4 [shape = 's32[1]{0}', space=sflag, size = 0x4, scoped, tag = 'scoped memory for tpu_custom_call.1']
    #allocation5 [shape = 'u8[1024]{0}', space=vmem, size = 0x400, scoped, tag = 'input window, operand 1, single buffered']
    #allocation6 [shape = 's32[1]{0}', space=sflag, size = 0x4, scoped, tag = 'scoped memory for tpu_custom_call.1']
    #allocation7 [shape = 'u8[2048]{0}', space=vmem, size = 0x800, scoped, tag = 'input window, operand 2, single buffered']
    #allocation8 [shape = 'u8[2048]{0}', space=vmem, size = 0x800, scoped, tag = 'output window, operand 0, single buffered']
    %8 = vsyncpa [#allocation3], 0
    %9 = vsyncpa [#allocation6], 0
    %10 = vsyncpa [#allocation4], 0
    // Predicated region
    $region2: #{tpu_custom_call.1} parent=1 // pred_check
      _
    $region3: #{tpu_custom_call.1} parent=1 // pred_check_branch
      %12 = sbr.rel (0) target = $region5
    $region4: #{tpu_custom_call.1} parent=1 // pred_region
      %14 = vsyncadd [#allocation3], 0
      %s16 = sshll.u32 %s0, 4
      %s17 = int_to_ptr.hbm [resolvable:$true] %s16
      %s18 = sshll.u32 [#allocation2], 4
      %s19 = int_to_ptr.vmem [resolvable:$true] %s18
      %21 = dma.hbm_to_vmem [thread:$0]  %s17, 64, %s19, [#allocation3]
    $region5: #{tpu_custom_call.1} parent=1 // pred_fallthru
      _
    // Predicated region
    $region6: #{tpu_custom_call.1} parent=1 // pred_check
      _
    $region7: #{tpu_custom_call.1} parent=1 // pred_check_branch
      %23 = sbr.rel (0) target = $region9
    $region8: #{tpu_custom_call.1} parent=1 // pred_region
      %25 = vsyncadd [#allocation6], 0
      %s27 = sshll.u32 %s1, 4
      %s28 = int_to_ptr.hbm [resolvable:$true] %s27
      %s29 = sshll.u32 [#allocation5], 4
      %s30 = int_to_ptr.vmem [resolvable:$true] %s29
      %32 = dma.hbm_to_vmem [thread:$0]  %s28, 32, %s30, [#allocation6]
    $region9: #{tpu_custom_call.1} parent=1 // pred_fallthru
      _
    // Predicated region
    $region10: #{tpu_custom_call.1} parent=1 // pred_check
      _
    $region11: #{tpu_custom_call.1} parent=1 // pred_check_branch
      %34 = sbr.rel (0) target = $region13
    $region12: #{tpu_custom_call.1} parent=1 // pred_region
      %36 = vsyncadd [#allocation6], 0
      %s38 = sshll.u32 %s2, 4
      %s39 = int_to_ptr.hbm [resolvable:$true] %s38
      %s40 = sshll.u32 [#allocation7], 4
      %s41 = int_to_ptr.vmem [resolvable:$true] %s40
      %43 = dma.hbm_to_vmem [thread:$0]  %s39, 64, %s41, [#allocation6]
    $region13: #{tpu_custom_call.1} parent=1 // pred_fallthru
      _
    // Predicated region
    $region14: #{tpu_custom_call.1} parent=1 // pred_check
      _
    $region15: #{tpu_custom_call.1} parent=1 // pred_check_branch
      %45 = sbr.rel (0) target = $region17
    $region16: #{tpu_custom_call.1} parent=1 // pred_region
      %47 = dma.done [#allocation3], 64
    $region17: #{tpu_custom_call.1} parent=1 // pred_fallthru
      _
    // Predicated region
    $region18: #{tpu_custom_call.1} parent=1 // pred_check
      _
    $region19: #{tpu_custom_call.1} parent=1 // pred_check_branch
      %49 = sbr.rel (0) target = $region21
    $region20: #{tpu_custom_call.1} parent=1 // pred_region
      %51 = dma.done [#allocation6], 32
    $region21: #{tpu_custom_call.1} parent=1 // pred_fallthru
      _
    // Predicated region
    $region22: #{tpu_custom_call.1} parent=1 // pred_check
      _
    $region23: #{tpu_custom_call.1} parent=1 // pred_check_branch
      %53 = sbr.rel (0) target = $region25
    $region24: #{tpu_custom_call.1} parent=1 // pred_region
      %55 = dma.done [#allocation6], 64
    $region25: #{tpu_custom_call.1} parent=1 // pred_fallthru
      _
    %v56 = vld [vmem:[#allocation2] sm:$0xf]
    %v57 = vld [vmem:[#allocation5] sm:$0x3]
    %v59 = vperm.slane %v57, 0
    %v60 = vperm.slane %v57, 1
    %v61 = vrot.slane %v60, 6
    %vm62 = vcmask 1041408
    %v63 = vsel %vm62, %v59, %v61
    %v65 = vadd.f32 %v56, %v63
    %v66 = vld [vmem:[#allocation7] sm:$0xf]
    %v67 = vadd.s32 %v66, 2147483648
    %vm69 = vcmp.ge.s32.totalorder %v67, 2576980378
    %v70 = vmul.f32 %v65, 1.1111112
    %v71 = vsel %vm69, %v70, 0.0
    %72 = vst [vmem:[#allocation8] sm:$0xf] %v71
    // Predicated region
    $region26: #{tpu_custom_call.1} parent=1 // pred_check
      _
    $region27: #{tpu_custom_call.1} parent=1 // pred_check_branch
      %74 = sbr.rel (0) target = $region29
    $region28: #{tpu_custom_call.1} parent=1 // pred_region
      %76 = vsyncadd [#allocation4], 0
      %s78 = sshll.u32 [#allocation8], 4
      %s79 = int_to_ptr.vmem [resolvable:$true] %s78
      %s80 = sshll.u32 %s3, 4
      %s81 = int_to_ptr.hbm [resolvable:$true] %s80
      %83 = dma.vmem_to_hbm [thread:$0]  %s79, 64, %s81, [#allocation4]
    $region29: #{tpu_custom_call.1} parent=1 // pred_fallthru
      _
    // Predicated region
    $region30: #{tpu_custom_call.1} parent=1 // pred_check
      _
    $region31: #{tpu_custom_call.1} parent=1 // pred_check_branch
      %85 = sbr.rel (0) target = $region33
    $region32: #{tpu_custom_call.1} parent=1 // pred_region
      %87 = dma.done [#allocation4], 64
    $region33: #{tpu_custom_call.1} parent=1 // pred_fallthru
      _
    %88 = vsyncpa [#allocation3], 1
    %89 = vsyncpa [#allocation6], 1
    %90 = vsyncpa [#allocation4], 1

</llo_original>
